<compile_context>
chip_gen: v7x
topology: tpu7x:2x2x1
jax: 0.10.0
libtpu: 0.0.40
codegen_flags: <defaults>
</compile_context>

<pallas_src>
import functools

import jax
import jax.numpy as jnp
import numpy as np
from jax.experimental import pallas as pl
from jax.experimental.pallas import tpu as pltpu


def _cnn_pooled_kernel(bt, l_pad, e_pad, max_fs, n_tot, t_min, t_eval, extras,
                       x_ref, w_ref, b_ref, o_ref):
    """One batch tile: fused multi-branch conv + max-over-time pool.

    x_ref : (1, bt*l_pad, e_pad)  bf16 embedded tokens (zero-padded E/L/B).
    w_ref : (max_fs*e_pad, n_tot) bf16 packed, channel-folded conv weights;
            rows [dt*e_pad, (dt+1)*e_pad) are the offset-dt taps, zeroed for
            branches with fs <= dt and for padded embedding columns.
    b_ref : (1, n_tot) f32 packed bias (zero on padded lanes).
    o_ref : (1, bt, n_tot) f32 ReLU(max-pooled conv + bias) features.
    """
    x = x_ref[0]                                           # (R, E_pad) bf16

    def tap(dt):
        # Full-length matmul against the offset-dt weight slice; no shifting
        # of x and no window materialization.
        y = jnp.dot(x, w_ref[dt * e_pad:(dt + 1) * e_pad, :],
                    preferred_element_type=jnp.float32)    # (R, n_tot) f32
        return y.reshape(bt, l_pad, n_tot)

    # conv[b, u, :] = sum_dt y_dt[b, u + dt, :]; the time offset is a static
    # slice per tap, so it never mixes rows of different sentences.
    conv = tap(0)[:, 0:t_eval, :]
    for dt in range(1, max_fs):
        conv = conv + tap(dt)[:, dt:dt + t_eval, :]

    # Max over the time range valid for every branch: static slice, no mask.
    pool = jnp.max(conv[:, 0:t_min, :], axis=1)            # (bt, n_tot)

    # Remaining time positions are valid only for a lane-prefix of branches
    # (branches are packed sorted by ascending filter size).
    if extras:
        lane = jax.lax.broadcasted_iota(jnp.int32, (bt, n_tot), 1)
        for u, cnt in extras:
            pool = jnp.maximum(pool,
                               jnp.where(lane < cnt, conv[:, u, :], -1e30))

    # Bias + ReLU deferred past the pool (commutes with max; ReLU monotone).
    o_ref[0] = jnp.maximum(pool + b_ref[...], 0.0)


def cnn_forward(token_ids, emb_matrix, conv_weights, conv_biases, fc_w, fc_b,
                filter_sizes, *, compute_dtype=jnp.bfloat16,
                max_tile_rows=4096):
    B, L = token_ids.shape
    E = emb_matrix.shape[1]
    nfs = [int(W.shape[0]) for W in conv_weights]
    num_br = len(filter_sizes)
    max_fs, min_fs = max(filter_sizes), min(filter_sizes)
    assert max_fs <= L, "filter size larger than sequence length"

    # Lane/sublane-friendly padding (exact zeros, stripped again below).
    E_pad = max(128, -(-E // 128) * 128)
    L_pad = -(-(L + max_fs - min_fs) // 8) * 8   # room for the largest tap slice
    n_total = max(128, -(-sum(nfs) // 128) * 128)
    t_min = L - max_fs + 1          # time range valid for every branch
    t_max = L - min_fs + 1
    t_eval = t_max

    # ---- Pack conv weights / biases into one lane-dense block. -------------
    # Channel fold: `embedding` and `ns_embedding` are both initialized from
    # emb_matrix, so the two conv input channels are identical and the conv
    # weights can be summed over the channel dim.
    # TODO(synk): pass both embedding tables separately (and drop the fold) if
    # a trained checkpoint with a diverged ns_embedding is ever used.
    order = sorted(range(num_br), key=lambda i: filter_sizes[i])
    w_pack = jnp.zeros((max_fs * E_pad, n_total), jnp.float32)
    b_pack = jnp.zeros((1, n_total), jnp.float32)
    lane_off = [0] * num_br
    off = 0
    for i in order:
        fs, nf = filter_sizes[i], nfs[i]
        Wf = conv_weights[i].astype(jnp.float32).sum(axis=1)   # (nf, fs, E)
        for dt in range(fs):
            w_pack = w_pack.at[dt * E_pad:dt * E_pad + E, off:off + nf].set(
                Wf[:, dt, :].T)
        b_pack = b_pack.at[0, off:off + nf].set(conv_biases[i].astype(jnp.float32))
        lane_off[i] = off
        off += nf
    w_pack = w_pack.astype(compute_dtype)

    # Extra time positions u in [t_min, t_max): how many leading packed lanes
    # (ascending-fs order) are still valid, i.e. fs <= L - u.
    sorted_fs_nf = [(filter_sizes[i], nfs[i]) for i in order]
    extras = tuple(
        (u, int(sum(nf for fs, nf in sorted_fs_nf if fs <= L - u)))
        for u in range(t_min, t_max))

    # ---- Embedding gather directly in the compute dtype (no f32 staging). --
    # Dropout / Dropout2d are inference-time identity.
    emb_c = emb_matrix.astype(compute_dtype)
    if E_pad != E:
        emb_c = jnp.pad(emb_c, ((0, 0), (0, E_pad - E)))
    embed = emb_c[token_ids]                                  # (B, L, E_pad)
    if L_pad != L:
        embed = jnp.pad(embed, ((0, 0), (0, L_pad - L), (0, 0)))

    # ---- Batch tiling: one grid step = Bt sentences = Bt*L_pad matmul rows. -
    Bt = max(1, min(B, max(1, max_tile_rows // L_pad)))
    n_tiles = -(-B // Bt)
    if n_tiles == 1 and B >= 16:      # give both v7x TensorCores work
        Bt = -(-B // 2)
        n_tiles = 2
    B_pad = n_tiles * Bt
    if B_pad != B:
        embed = jnp.pad(embed, ((0, B_pad - B), (0, 0), (0, 0)))
    x_in = embed.reshape(n_tiles, Bt * L_pad, E_pad)

    kernel = functools.partial(_cnn_pooled_kernel, Bt, L_pad, E_pad, max_fs,
                               n_total, t_min, t_eval, extras)
    pooled = pl.pallas_call(
        kernel,
        out_shape=jax.ShapeDtypeStruct((n_tiles, Bt, n_total), jnp.float32),
        grid=(n_tiles,),
        in_specs=[
            pl.BlockSpec((1, Bt * L_pad, E_pad), lambda i: (i, 0, 0)),
            pl.BlockSpec((max_fs * E_pad, n_total), lambda i: (0, 0)),
            pl.BlockSpec((1, n_total), lambda i: (0, 0)),
        ],
        out_specs=pl.BlockSpec((1, Bt, n_total), lambda i: (i, 0, 0)),
        compiler_params=pltpu.CompilerParams(
            dimension_semantics=("parallel",),
            vmem_limit_bytes=32 * 1024 * 1024),
    )(x_in, w_pack, b_pack)

    pooled = pooled.reshape(B_pad, n_total)[:B]
    # Re-assemble branch features in the original torch.cat order.
    feats = jnp.concatenate(
        [pooled[:, lane_off[i]:lane_off[i] + nfs[i]] for i in range(num_br)],
        axis=1)
    # Tiny final Linear (sum_nf -> 6) in plain f32 JAX.
    return feats @ fc_w.astype(jnp.float32).T + fc_b.astype(jnp.float32)


def reference_forward(token_ids, emb_matrix, conv_weights, conv_biases, fc_w,
                      fc_b, filter_sizes):
    """Pure-JAX f32 reference reproducing the PyTorch forward (eval mode)."""
    embed = emb_matrix[token_ids]
    x = jnp.stack([embed, embed], axis=1)              # (B, 2, L, E)
    pooled = []
    for fs, W, b in zip(filter_sizes, conv_weights, conv_biases):
        out = jax.lax.conv_general_dilated(
            x, W, window_strides=(1, 1), padding="VALID",
            dimension_numbers=("NCHW", "OIHW", "NCHW"))           # (B, nf, T, 1)
        out = out + b[None, :, None, None]
        out = jnp.maximum(out, 0.0)[..., 0]                       # (B, nf, T)
        pooled.append(jnp.max(out, axis=2))                       # (B, nf)
    cat = jnp.concatenate(pooled, axis=1)
    return cat @ fc_w.T + fc_b


def _make_case(seed, B, L, vocab_size, embed_size, n_filters, filter_sizes,
               n_classes=6):
    key = jax.random.PRNGKey(seed)
    k_emb, k_tok, k_fcw, k_fcb, *k_convs = jax.random.split(
        key, 4 + 2 * len(filter_sizes))
    emb_matrix = jax.random.normal(k_emb, (vocab_size, embed_size), jnp.float32)
    token_ids = jax.random.randint(k_tok, (B, L), 0, vocab_size)
    conv_weights, conv_biases = [], []
    for i, fs in enumerate(filter_sizes):
        kw, kb = k_convs[2 * i], k_convs[2 * i + 1]
        conv_weights.append(
            0.1 * jax.random.normal(kw, (n_filters[i], 2, fs, embed_size),
                                    jnp.float32))
        conv_biases.append(
            0.1 * jax.random.normal(kb, (n_filters[i],), jnp.float32))
    sum_nf = int(np.sum(n_filters))
    fc_w = 0.1 * jax.random.normal(k_fcw, (n_classes, sum_nf), jnp.float32)
    fc_b = 0.1 * jax.random.normal(k_fcb, (n_classes,), jnp.float32)
    return (token_ids, emb_matrix, conv_weights, conv_biases, fc_w, fc_b,
            filter_sizes)


if __name__ == "__main__":
    # Case 1: small config consistent with the module's __init__ (single tile,
    # E and L padding paths exercised).
    args1 = _make_case(0, B=2, L=8, vocab_size=50, embed_size=32,
                       n_filters=[8, 8, 8], filter_sizes=[2, 3, 4])
    out1 = jax.block_until_ready(cnn_forward(*args1))
    ref1 = reference_forward(*args1)
    np.testing.assert_allclose(np.asarray(out1), np.asarray(ref1),
                               rtol=5e-2, atol=5e-2)

    # Case 2: multi-tile grid, unsorted filter sizes, heterogeneous filter
    # counts, batch padding.
    args2 = _make_case(0, B=18, L=9, vocab_size=40, embed_size=48,
                       n_filters=[8, 16, 8], filter_sizes=[4, 2, 3])
    out2 = jax.block_until_ready(cnn_forward(*args2, max_tile_rows=64))
    ref2 = reference_forward(*args2)
    np.testing.assert_allclose(np.asarray(out2), np.asarray(ref2),
                               rtol=5e-2, atol=5e-2)

    print("KERNEL_OK")
</pallas_src>

<mosaic_0001>
module attributes {stable_mosaic.version = 11 : i64} {
  func.func @_cnn_pooled_kernel(%arg0: i32, %arg1: memref<1x32x128xbf16, #tpu.memory_space<vmem>>, %arg2: memref<512x128xbf16, #tpu.memory_space<vmem>>, %arg3: memref<1x128xf32, #tpu.memory_space<vmem>>, %arg4: memref<1x2x128xf32, #tpu.memory_space<vmem>>) attributes {dimension_semantics = [#tpu.dimension_semantics<parallel>], iteration_bounds = array<i64: 1>, scalar_prefetch = 0 : i64, scratch_operands = 0 : i64, tpu.core_type = #tpu.core_type<tc>, window_params = [{transform_indices = @transform_0, window_bounds = array<i64: 1, 32, 128>}, {pipeline_mode = #tpu.pipeline_mode<synchronous>, transform_indices = @transform_1, window_bounds = array<i64: 512, 128>}, {pipeline_mode = #tpu.pipeline_mode<synchronous>, transform_indices = @transform_2, window_bounds = array<i64: 1, 128>}, {transform_indices = @transform_3, window_bounds = array<i64: 1, 2, 128>}]} {
    %c0 = arith.constant 0 : index
    %c0_0 = arith.constant 0 : index
    %c0_1 = arith.constant 0 : index
    %0 = vector.load %arg1[%c0, %c0_0, %c0_1] : memref<1x32x128xbf16, #tpu.memory_space<vmem>>, vector<1x32x128xbf16>
    %1 = vector.shape_cast %0 : vector<1x32x128xbf16> to vector<32x128xbf16>
    %c0_2 = arith.constant 0 : index
    %c0_3 = arith.constant 0 : index
    %2 = vector.load %arg2[%c0_2, %c0_3] : memref<512x128xbf16, #tpu.memory_space<vmem>>, vector<128x128xbf16>
    %cst = arith.constant dense<0.000000e+00> : vector<32x128xf32>
    %3 = tpu.matmul %1, %2, %cst {dimension_numbers = #tpu.dot_dimension_numbers<[1], [0], [0], [1], [0, 0, 1, 1], [], []>} : vector<32x128xbf16>, vector<128x128xbf16>, vector<32x128xf32> -> vector<32x128xf32>
    %4 = vector.shape_cast %3 : vector<32x128xf32> to vector<2x16x128xf32>
    %5 = vector.extract_strided_slice %4 {offsets = [0, 0, 0], sizes = [2, 7, 128], strides = [1, 1, 1]} : vector<2x16x128xf32> to vector<2x7x128xf32>
    %c128 = arith.constant 128 : index
    %c0_4 = arith.constant 0 : index
    %6 = vector.load %arg2[%c128, %c0_4] : memref<512x128xbf16, #tpu.memory_space<vmem>>, vector<128x128xbf16>
    %cst_5 = arith.constant dense<0.000000e+00> : vector<32x128xf32>
    %7 = tpu.matmul %1, %6, %cst_5 {dimension_numbers = #tpu.dot_dimension_numbers<[1], [0], [0], [1], [0, 0, 1, 1], [], []>} : vector<32x128xbf16>, vector<128x128xbf16>, vector<32x128xf32> -> vector<32x128xf32>
    %8 = vector.shape_cast %7 : vector<32x128xf32> to vector<2x16x128xf32>
    %9 = vector.extract_strided_slice %8 {offsets = [0, 1, 0], sizes = [2, 7, 128], strides = [1, 1, 1]} : vector<2x16x128xf32> to vector<2x7x128xf32>
    %10 = arith.addf %5, %9 : vector<2x7x128xf32>
    %c256 = arith.constant 256 : index
    %c0_6 = arith.constant 0 : index
    %11 = vector.load %arg2[%c256, %c0_6] : memref<512x128xbf16, #tpu.memory_space<vmem>>, vector<128x128xbf16>
    %cst_7 = arith.constant dense<0.000000e+00> : vector<32x128xf32>
    %12 = tpu.matmul %1, %11, %cst_7 {dimension_numbers = #tpu.dot_dimension_numbers<[1], [0], [0], [1], [0, 0, 1, 1], [], []>} : vector<32x128xbf16>, vector<128x128xbf16>, vector<32x128xf32> -> vector<32x128xf32>
    %13 = vector.shape_cast %12 : vector<32x128xf32> to vector<2x16x128xf32>
    %14 = vector.extract_strided_slice %13 {offsets = [0, 2, 0], sizes = [2, 7, 128], strides = [1, 1, 1]} : vector<2x16x128xf32> to vector<2x7x128xf32>
    %15 = arith.addf %10, %14 : vector<2x7x128xf32>
    %c384 = arith.constant 384 : index
    %c0_8 = arith.constant 0 : index
    %16 = vector.load %arg2[%c384, %c0_8] : memref<512x128xbf16, #tpu.memory_space<vmem>>, vector<128x128xbf16>
    %cst_9 = arith.constant dense<0.000000e+00> : vector<32x128xf32>
    %17 = tpu.matmul %1, %16, %cst_9 {dimension_numbers = #tpu.dot_dimension_numbers<[1], [0], [0], [1], [0, 0, 1, 1], [], []>} : vector<32x128xbf16>, vector<128x128xbf16>, vector<32x128xf32> -> vector<32x128xf32>
    %18 = vector.shape_cast %17 : vector<32x128xf32> to vector<2x16x128xf32>
    %19 = vector.extract_strided_slice %18 {offsets = [0, 3, 0], sizes = [2, 7, 128], strides = [1, 1, 1]} : vector<2x16x128xf32> to vector<2x7x128xf32>
    %20 = arith.addf %15, %19 : vector<2x7x128xf32>
    %21 = vector.extract_strided_slice %20 {offsets = [0, 0, 0], sizes = [2, 5, 128], strides = [1, 1, 1]} : vector<2x7x128xf32> to vector<2x5x128xf32>
    %cst_10 = arith.constant dense<0xFF800000> : vector<2x128xf32>
    %22 = vector.multi_reduction <maximumf>, %21, %cst_10 [1] : vector<2x5x128xf32> to vector<2x128xf32>
    %23 = tpu.iota {dimensions = array<i32: 1>} : vector<2x128xi32>
    %c16_i32 = arith.constant 16 : i32
    %24 = vector.broadcast %c16_i32 : i32 to vector<2x128xi32>
    %25 = arith.cmpi slt, %23, %24 : vector<2x128xi32>
    %26 = vector.extract_strided_slice %20 {offsets = [0, 5, 0], sizes = [2, 1, 128], strides = [1, 1, 1]} : vector<2x7x128xf32> to vector<2x1x128xf32>
    %27 = vector.shape_cast %26 : vector<2x1x128xf32> to vector<2x128xf32>
    %cst_11 = arith.constant -1.000000e+30 : f32
    %28 = vector.broadcast %cst_11 : f32 to vector<2x128xf32>
    %29 = arith.select %25, %27, %28 : vector<2x128xi1>, vector<2x128xf32>
    %30 = arith.maximumf %22, %29 : vector<2x128xf32>
    %c8_i32 = arith.constant 8 : i32
    %31 = vector.broadcast %c8_i32 : i32 to vector<2x128xi32>
    %32 = arith.cmpi slt, %23, %31 : vector<2x128xi32>
    %33 = vector.extract_strided_slice %20 {offsets = [0, 6, 0], sizes = [2, 1, 128], strides = [1, 1, 1]} : vector<2x7x128xf32> to vector<2x1x128xf32>
    %34 = vector.shape_cast %33 : vector<2x1x128xf32> to vector<2x128xf32>
    %cst_12 = arith.constant -1.000000e+30 : f32
    %35 = vector.broadcast %cst_12 : f32 to vector<2x128xf32>
    %36 = arith.select %32, %34, %35 : vector<2x128xi1>, vector<2x128xf32>
    %37 = arith.maximumf %30, %36 : vector<2x128xf32>
    %c0_13 = arith.constant 0 : index
    %c0_14 = arith.constant 0 : index
    %38 = vector.load %arg3[%c0_13, %c0_14] : memref<1x128xf32, #tpu.memory_space<vmem>>, vector<1x128xf32>
    %39 = vector.broadcast %38 : vector<1x128xf32> to vector<2x128xf32>
    %40 = arith.addf %37, %39 : vector<2x128xf32>
    %cst_15 = arith.constant 0.000000e+00 : f32
    %41 = vector.broadcast %cst_15 : f32 to vector<2x128xf32>
    %42 = arith.maximumf %40, %41 : vector<2x128xf32>
    %c0_16 = arith.constant 0 : index
    %c0_17 = arith.constant 0 : index
    %c0_18 = arith.constant 0 : index
    %43 = vector.load %arg4[%c0_16, %c0_17, %c0_18] : memref<1x2x128xf32, #tpu.memory_space<vmem>>, vector<1x2x128xf32>
    %44 = vector.shape_cast %43 : vector<1x2x128xf32> to vector<2x128xf32>
    %45 = vector.shape_cast %42 : vector<2x128xf32> to vector<1x2x128xf32>
    tpu.vector_store %arg4[%c0_16, %c0_17, %c0_18], %45 {strides = array<i32>} : memref<1x2x128xf32, #tpu.memory_space<vmem>>, vector<1x2x128xf32>,
    return
  }
  func.func @transform_0(%arg0: i32) -> (i32, i32, i32) {
    %c0_i32 = arith.constant 0 : i32
    %c0_i32_0 = arith.constant 0 : i32
    %c0_i32_1 = arith.constant 0 : i32
    return %arg0, %c0_i32, %c0_i32_0 : i32, i32, i32
  }
  func.func @transform_1(%arg0: i32) -> (i32, i32) {
    %c0_i32 = arith.constant 0 : i32
    %c0_i32_0 = arith.constant 0 : i32
    %c0_i32_1 = arith.constant 0 : i32
    return %c0_i32, %c0_i32_0 : i32, i32
  }
  func.func @transform_2(%arg0: i32) -> (i32, i32) {
    %c0_i32 = arith.constant 0 : i32
    %c0_i32_0 = arith.constant 0 : i32
    %c0_i32_1 = arith.constant 0 : i32
    return %c0_i32, %c0_i32_0 : i32, i32
  }
  func.func @transform_3(%arg0: i32) -> (i32, i32, i32) {
    %c0_i32 = arith.constant 0 : i32
    %c0_i32_0 = arith.constant 0 : i32
    %c0_i32_1 = arith.constant 0 : i32
    return %arg0, %c0_i32, %c0_i32_0 : i32, i32, i32
  }
}

</mosaic_0001>

<llo_original>
// kernel: tpu_custom_call.1
$region0: #{tpu_custom_call.1}
  #allocation0 [shape = 'u32[]', space=smem, size = 0x4, offset = 0x4, fixed_abs, tag = 'smem constant byte address 0x4 - core index']
  #allocation1 [shape = 'u32[144,128]{1,0:T(1,128)}', space=vmem, size = 0x12000, scoped, tag = 'internal scratch']
  %s0 = inlined_call_operand.hbm [shape: bf16[1,32,128], index: 0, kind: input, shape index: {}]
  %s1 = inlined_call_operand.hbm [shape: bf16[512,128], index: 1, kind: input, shape index: {}]
  %s2 = inlined_call_operand.vmem [shape: f32[1,128], index: 2, kind: input, shape index: {}]
  %s3 = inlined_call_operand.hbm [shape: f32[1,2,128], index: 3, kind: output, shape index: {}]
  %s4 = sld [smem:[#allocation0]]
  $region30: #{tpu_custom_call.1} parent=0
    _
  %s6 = ssub.s32 1, %s4
  %s7 = scalar_select 0, %s6, %s4
  $region1: #{tpu_custom_call.1} parent=0
    #allocation2 [shape = 'u8[8192]{0}', space=vmem, size = 0x2000, scoped, tag = 'input window, operand 0, single buffered']
    #allocation3 [shape = 's32[1]{0}', space=sflag, size = 0x4, scoped, tag = 'scoped memory for tpu_custom_call.1']
    #allocation4 [shape = 's32[1]{0}', space=sflag, size = 0x4, scoped, tag = 'scoped memory for tpu_custom_call.1']
    #allocation5 [shape = 'u8[131072]{0}', space=vmem, size = 0x20000, scoped, tag = 'input window, operand 1, single buffered']
    #allocation6 [shape = 's32[1]{0}', space=sflag, size = 0x4, scoped, tag = 'scoped memory for tpu_custom_call.1']
    #allocation7 [shape = 'u8[1024]{0}', space=vmem, size = 0x400, scoped, tag = 'output window, operand 0, single buffered']
    %8 = vsyncpa [#allocation3], 0
    %9 = vsyncpa [#allocation6], 0
    %10 = vsyncpa [#allocation4], 0
    // Predicated region
    $region2: #{tpu_custom_call.1} parent=1 // pred_check
      _
    $region3: #{tpu_custom_call.1} parent=1 // pred_check_branch
      %12 = sbr.rel (0) target = $region5
    $region4: #{tpu_custom_call.1} parent=1 // pred_region
      %s14 = ssub.s32 256, 256
      %15 = vsyncadd [#allocation3], %s14
      %s16 = sshll.u32 [#allocation2], 4
      %s17 = int_to_ptr.vmem [resolvable:$true] %s16
      %22 = dma.hbm_to_vmem [thread:$0]  %s0, 256, %s17, [#allocation3], 64, 64, 4
    $region5: #{tpu_custom_call.1} parent=1 // pred_fallthru
      _
    // Predicated region
    $region6: #{tpu_custom_call.1} parent=1 // pred_check
      _
    $region7: #{tpu_custom_call.1} parent=1 // pred_check_branch
      %24 = sbr.rel (0) target = $region9
    $region8: #{tpu_custom_call.1} parent=1 // pred_region
      %s26 = ssub.s32 4096, 4096
      %27 = vsyncadd [#allocation6], %s26
      %s28 = sshll.u32 [#allocation5], 4
      %s29 = int_to_ptr.vmem [resolvable:$true] %s28
      %34 = dma.hbm_to_vmem [thread:$0]  %s1, 4096, %s29, [#allocation6], 64, 64, 4
    $region9: #{tpu_custom_call.1} parent=1 // pred_fallthru
      _
    // Predicated region
    $region10: #{tpu_custom_call.1} parent=1 // pred_check
      _
    $region11: #{tpu_custom_call.1} parent=1 // pred_check_branch
      %36 = sbr.rel (0) target = $region13
    $region12: #{tpu_custom_call.1} parent=1 // pred_region
      _
    $region13: #{tpu_custom_call.1} parent=1 // pred_fallthru
      _
    // Predicated region
    $region14: #{tpu_custom_call.1} parent=1 // pred_check
      _
    $region15: #{tpu_custom_call.1} parent=1 // pred_check_branch
      %38 = sbr.rel (0) target = $region17
    $region16: #{tpu_custom_call.1} parent=1 // pred_region
      %39 = dma.done [#allocation3], 256
    $region17: #{tpu_custom_call.1} parent=1 // pred_fallthru
      _
    // Predicated region
    $region18: #{tpu_custom_call.1} parent=1 // pred_check
      _
    $region19: #{tpu_custom_call.1} parent=1 // pred_check_branch
      %41 = sbr.rel (0) target = $region21
    $region20: #{tpu_custom_call.1} parent=1 // pred_region
      %42 = dma.done [#allocation6], 4096
    $region21: #{tpu_custom_call.1} parent=1 // pred_fallthru
      _
    %v44 = vld [vmem:[#allocation2] sm:$0xf]
    %v45 = vld [vmem:[#allocation2 + $0x4] sm:$0xf]
    %v46 = vld [vmem:[#allocation2 + $0x8] sm:$0xf]
    %v47 = vld [vmem:[#allocation2 + $0xc] sm:$0xf]
    %v48 = vld [vmem:[#allocation5] sm:$0xf]
    %v49 = vld [vmem:[#allocation5 + $0x4] sm:$0xf]
    %v50 = vld [vmem:[#allocation5 + $0x8] sm:$0xf]
    %v51 = vld [vmem:[#allocation5 + $0xc] sm:$0xf]
    %v52 = vld [vmem:[#allocation5 + $0x10] sm:$0xf]
    %v53 = vld [vmem:[#allocation5 + $0x14] sm:$0xf]
    %v54 = vld [vmem:[#allocation5 + $0x18] sm:$0xf]
    %v55 = vld [vmem:[#allocation5 + $0x1c] sm:$0xf]
    %v56 = vld [vmem:[#allocation5 + $0x20] sm:$0xf]
    %v57 = vld [vmem:[#allocation5 + $0x24] sm:$0xf]
    %v58 = vld [vmem:[#allocation5 + $0x28] sm:$0xf]
    %v59 = vld [vmem:[#allocation5 + $0x2c] sm:$0xf]
    %v60 = vld [vmem:[#allocation5 + $0x30] sm:$0xf]
    %v61 = vld [vmem:[#allocation5 + $0x34] sm:$0xf]
    %v62 = vld [vmem:[#allocation5 + $0x38] sm:$0xf]
    %v63 = vld [vmem:[#allocation5 + $0x3c] sm:$0xf]
    %v68 = vunpack.c.l.b16 %v44
    %v69 = vunpack.c.l.b16 %v45
    %v70 = vunpack.c.l.b16 %v46
    %v71 = vunpack.c.l.b16 %v47
    %v72 = vpack.c.b16 %v69, %v68
    %v73 = vpack.c.b16 %v71, %v70
    %v92 = vunpack.c.l.b16 %v48
    %v93 = vunpack.c.l.b16 %v49
    %v94 = vunpack.c.l.b16 %v50
    %v95 = vunpack.c.l.b16 %v51
    %v96 = vunpack.c.l.b16 %v52
    %v97 = vunpack.c.l.b16 %v53
    %v98 = vunpack.c.l.b16 %v54
    %v99 = vunpack.c.l.b16 %v55
    %v100 = vunpack.c.l.b16 %v56
    %v101 = vunpack.c.l.b16 %v57
    %v102 = vunpack.c.l.b16 %v58
    %v103 = vunpack.c.l.b16 %v59
    %v104 = vunpack.c.l.b16 %v60
    %v105 = vunpack.c.l.b16 %v61
    %v106 = vunpack.c.l.b16 %v62
    %v107 = vunpack.c.l.b16 %v63
    %v108 = vpack.c.b16 %v93, %v92
    %v109 = vpack.c.b16 %v95, %v94
    %v110 = vpack.c.b16 %v97, %v96
    %v111 = vpack.c.b16 %v99, %v98
    %v112 = vpack.c.b16 %v101, %v100
    %v113 = vpack.c.b16 %v103, %v102
    %v114 = vpack.c.b16 %v105, %v104
    %v115 = vpack.c.b16 %v107, %v106
    %124 = vmatprep.subr.bf16.mxu0 0
    %125 = vmatpush1.bf16.msra.mxu0 %v108
    %126 = vmatprep.subr.bf16.mxu0 0
    %127 = vmatpush1.bf16.msra.mxu0 %v109
    %128 = vmatprep.subr.bf16.mxu0 0
    %129 = vmatpush1.bf16.msra.mxu0 %v110
    %130 = vmatprep.subr.bf16.mxu0 0
    %131 = vmatpush1.bf16.msra.mxu0 %v111
    %132 = vmatprep.subr.bf16.mxu0 0
    %133 = vmatpush1.bf16.msra.mxu0 %v112
    %134 = vmatprep.subr.bf16.mxu0 0
    %135 = vmatpush1.bf16.msra.mxu0 %v113
    %136 = vmatprep.subr.bf16.mxu0 0
    %137 = vmatpush1.bf16.msra.mxu0 %v114
    %138 = vmatprep.subr.bf16.mxu0 0
    %139 = vmatpush1.bf16.msra.mxu0 %v115
    %140 = vmatprep.subr.bf16.mxu0 0
    %141 = vmatpush1.bf16.msra.mxu0 0
    %142 = vmatprep.subr.bf16.mxu0 0
    %143 = vmatpush1.bf16.msra.mxu0 0
    %144 = vmatprep.subr.bf16.mxu0 0
    %145 = vmatpush1.bf16.msra.mxu0 0
    %146 = vmatprep.subr.bf16.mxu0 0
    %147 = vmatpush1.bf16.msra.mxu0 0
    %148 = vmatprep.subr.bf16.mxu0 0
    %149 = vmatpush1.bf16.msra.mxu0 0
    %150 = vmatprep.subr.bf16.mxu0 0
    %151 = vmatpush1.bf16.msra.mxu0 0
    %152 = vmatprep.subr.bf16.mxu0 0
    %153 = vmatpush1.bf16.msra.mxu0 0
    %154 = vmatprep.subr.bf16.mxu0 0
    %155 = vmatpush1.bf16.msra.mxu0 0
    %156 = vmatprep.mubr.bf16.mxu0 0
    %157 = vmatmul.mubr.bf16.gmra.mrb[0].mxu0 %v72
    %v158 = vpop.f32.mrb[0].mxu0
    %v159 = vadd.f32 0.0, %v158
    %v160 = vpop.f32.mrb[0].mxu0
    %v161 = vpop.f32.mrb[0].mxu0
    %v162 = vpop.f32.mrb[0].mxu0
    %163 = vmatprep.mubr.bf16.mxu0 0
    %164 = vmatmul.mubr.bf16.gmra.mrb[0].mxu0 %v73
    %v165 = vpop.f32.mrb[0].mxu0
    %v166 = vadd.f32 0.0, %v165
    %v167 = vpop.f32.mrb[0].mxu0
    %v168 = vpop.f32.mrb[0].mxu0
    %v169 = vpop.f32.mrb[0].mxu0
    %170 = vdwg.mxu0
    %v171 = vld [vmem:[#allocation5 + $0x40] sm:$0xf]
    %v172 = vld [vmem:[#allocation5 + $0x44] sm:$0xf]
    %v173 = vld [vmem:[#allocation5 + $0x48] sm:$0xf]
    %v174 = vld [vmem:[#allocation5 + $0x4c] sm:$0xf]
    %v175 = vld [vmem:[#allocation5 + $0x50] sm:$0xf]
    %v176 = vld [vmem:[#allocation5 + $0x54] sm:$0xf]
    %v177 = vld [vmem:[#allocation5 + $0x58] sm:$0xf]
    %v178 = vld [vmem:[#allocation5 + $0x5c] sm:$0xf]
    %v179 = vld [vmem:[#allocation5 + $0x60] sm:$0xf]
    %v180 = vld [vmem:[#allocation5 + $0x64] sm:$0xf]
    %v181 = vld [vmem:[#allocation5 + $0x68] sm:$0xf]
    %v182 = vld [vmem:[#allocation5 + $0x6c] sm:$0xf]
    %v183 = vld [vmem:[#allocation5 + $0x70] sm:$0xf]
    %v184 = vld [vmem:[#allocation5 + $0x74] sm:$0xf]
    %v185 = vld [vmem:[#allocation5 + $0x78] sm:$0xf]
    %v186 = vld [vmem:[#allocation5 + $0x7c] sm:$0xf]
    %v203 = vunpack.c.l.b16 %v171
    %v204 = vunpack.c.l.b16 %v172
    %v205 = vunpack.c.l.b16 %v173
    %v206 = vunpack.c.l.b16 %v174
    %v207 = vunpack.c.l.b16 %v175
    %v208 = vunpack.c.l.b16 %v176
    %v209 = vunpack.c.l.b16 %v177
    %v210 = vunpack.c.l.b16 %v178
    %v211 = vunpack.c.l.b16 %v179
    %v212 = vunpack.c.l.b16 %v180
    %v213 = vunpack.c.l.b16 %v181
    %v214 = vunpack.c.l.b16 %v182
    %v215 = vunpack.c.l.b16 %v183
    %v216 = vunpack.c.l.b16 %v184
    %v217 = vunpack.c.l.b16 %v185
    %v218 = vunpack.c.l.b16 %v186
    %v219 = vpack.c.b16 %v204, %v203
    %v220 = vpack.c.b16 %v206, %v205
    %v221 = vpack.c.b16 %v208, %v207
    %v222 = vpack.c.b16 %v210, %v209
    %v223 = vpack.c.b16 %v212, %v211
    %v224 = vpack.c.b16 %v214, %v213
    %v225 = vpack.c.b16 %v216, %v215
    %v226 = vpack.c.b16 %v218, %v217
    %235 = vmatprep.subr.bf16.mxu0 0
    %236 = vmatpush1.bf16.msra.mxu0 %v219
    %237 = vmatprep.subr.bf16.mxu0 0
    %238 = vmatpush1.bf16.msra.mxu0 %v220
    %239 = vmatprep.subr.bf16.mxu0 0
    %240 = vmatpush1.bf16.msra.mxu0 %v221
    %241 = vmatprep.subr.bf16.mxu0 0
    %242 = vmatpush1.bf16.msra.mxu0 %v222
    %243 = vmatprep.subr.bf16.mxu0 0
    %244 = vmatpush1.bf16.msra.mxu0 %v223
    %245 = vmatprep.subr.bf16.mxu0 0
    %246 = vmatpush1.bf16.msra.mxu0 %v224
    %247 = vmatprep.subr.bf16.mxu0 0
    %248 = vmatpush1.bf16.msra.mxu0 %v225
    %249 = vmatprep.subr.bf16.mxu0 0
    %250 = vmatpush1.bf16.msra.mxu0 %v226
    %251 = vmatprep.subr.bf16.mxu0 0
    %252 = vmatpush1.bf16.msra.mxu0 0
    %253 = vmatprep.subr.bf16.mxu0 0
    %254 = vmatpush1.bf16.msra.mxu0 0
    %255 = vmatprep.subr.bf16.mxu0 0
    %256 = vmatpush1.bf16.msra.mxu0 0
    %257 = vmatprep.subr.bf16.mxu0 0
    %258 = vmatpush1.bf16.msra.mxu0 0
    %259 = vmatprep.subr.bf16.mxu0 0
    %260 = vmatpush1.bf16.msra.mxu0 0
    %261 = vmatprep.subr.bf16.mxu0 0
    %262 = vmatpush1.bf16.msra.mxu0 0
    %263 = vmatprep.subr.bf16.mxu0 0
    %264 = vmatpush1.bf16.msra.mxu0 0
    %265 = vmatprep.subr.bf16.mxu0 0
    %266 = vmatpush1.bf16.msra.mxu0 0
    %267 = vmatprep.mubr.bf16.mxu0 0
    %268 = vmatmul.mubr.bf16.gmra.mrb[0].mxu0 %v72
    %v269 = vpop.f32.mrb[0].mxu0
    %v270 = vadd.f32 0.0, %v269
    %v271 = vpop.f32.mrb[0].mxu0
    %v272 = vpop.f32.mrb[0].mxu0
    %v273 = vpop.f32.mrb[0].mxu0
    %274 = vmatprep.mubr.bf16.mxu0 0
    %275 = vmatmul.mubr.bf16.gmra.mrb[0].mxu0 %v73
    %v276 = vpop.f32.mrb[0].mxu0
    %v277 = vadd.f32 0.0, %v276
    %v278 = vpop.f32.mrb[0].mxu0
    %v279 = vpop.f32.mrb[0].mxu0
    %v280 = vpop.f32.mrb[0].mxu0
    %281 = vdwg.mxu0
    %v284 = vrot.slane %v270, 1
    %v285 = vrot.slane %v277, 1
    %v288 = vadd.f32 %v159, %v284
    %v289 = vadd.f32 %v166, %v285
    %v290 = vld [vmem:[#allocation5 + $0x80] sm:$0xf]
    %v291 = vld [vmem:[#allocation5 + $0x84] sm:$0xf]
    %v292 = vld [vmem:[#allocation5 + $0x88] sm:$0xf]
    %v293 = vld [vmem:[#allocation5 + $0x8c] sm:$0xf]
    %v294 = vld [vmem:[#allocation5 + $0x90] sm:$0xf]
    %v295 = vld [vmem:[#allocation5 + $0x94] sm:$0xf]
    %v296 = vld [vmem:[#allocation5 + $0x98] sm:$0xf]
    %v297 = vld [vmem:[#allocation5 + $0x9c] sm:$0xf]
    %v298 = vld [vmem:[#allocation5 + $0xa0] sm:$0xf]
    %v299 = vld [vmem:[#allocation5 + $0xa4] sm:$0xf]
    %v300 = vld [vmem:[#allocation5 + $0xa8] sm:$0xf]
    %v301 = vld [vmem:[#allocation5 + $0xac] sm:$0xf]
    %v302 = vld [vmem:[#allocation5 + $0xb0] sm:$0xf]
    %v303 = vld [vmem:[#allocation5 + $0xb4] sm:$0xf]
    %v304 = vld [vmem:[#allocation5 + $0xb8] sm:$0xf]
    %v305 = vld [vmem:[#allocation5 + $0xbc] sm:$0xf]
    %v322 = vunpack.c.l.b16 %v290
    %v323 = vunpack.c.l.b16 %v291
    %v324 = vunpack.c.l.b16 %v292
    %v325 = vunpack.c.l.b16 %v293
    %v326 = vunpack.c.l.b16 %v294
    %v327 = vunpack.c.l.b16 %v295
    %v328 = vunpack.c.l.b16 %v296
    %v329 = vunpack.c.l.b16 %v297
    %v330 = vunpack.c.l.b16 %v298
    %v331 = vunpack.c.l.b16 %v299
    %v332 = vunpack.c.l.b16 %v300
    %v333 = vunpack.c.l.b16 %v301
    %v334 = vunpack.c.l.b16 %v302
    %v335 = vunpack.c.l.b16 %v303
    %v336 = vunpack.c.l.b16 %v304
    %v337 = vunpack.c.l.b16 %v305
    %v338 = vpack.c.b16 %v323, %v322
    %v339 = vpack.c.b16 %v325, %v324
    %v340 = vpack.c.b16 %v327, %v326
    %v341 = vpack.c.b16 %v329, %v328
    %v342 = vpack.c.b16 %v331, %v330
    %v343 = vpack.c.b16 %v333, %v332
    %v344 = vpack.c.b16 %v335, %v334
    %v345 = vpack.c.b16 %v337, %v336
    %354 = vmatprep.subr.bf16.mxu0 0
    %355 = vmatpush1.bf16.msra.mxu0 %v338
    %356 = vmatprep.subr.bf16.mxu0 0
    %357 = vmatpush1.bf16.msra.mxu0 %v339
    %358 = vmatprep.subr.bf16.mxu0 0
    %359 = vmatpush1.bf16.msra.mxu0 %v340
    %360 = vmatprep.subr.bf16.mxu0 0
    %361 = vmatpush1.bf16.msra.mxu0 %v341
    %362 = vmatprep.subr.bf16.mxu0 0
    %363 = vmatpush1.bf16.msra.mxu0 %v342
    %364 = vmatprep.subr.bf16.mxu0 0
    %365 = vmatpush1.bf16.msra.mxu0 %v343
    %366 = vmatprep.subr.bf16.mxu0 0
    %367 = vmatpush1.bf16.msra.mxu0 %v344
    %368 = vmatprep.subr.bf16.mxu0 0
    %369 = vmatpush1.bf16.msra.mxu0 %v345
    %370 = vmatprep.subr.bf16.mxu0 0
    %371 = vmatpush1.bf16.msra.mxu0 0
    %372 = vmatprep.subr.bf16.mxu0 0
    %373 = vmatpush1.bf16.msra.mxu0 0
    %374 = vmatprep.subr.bf16.mxu0 0
    %375 = vmatpush1.bf16.msra.mxu0 0
    %376 = vmatprep.subr.bf16.mxu0 0
    %377 = vmatpush1.bf16.msra.mxu0 0
    %378 = vmatprep.subr.bf16.mxu0 0
    %379 = vmatpush1.bf16.msra.mxu0 0
    %380 = vmatprep.subr.bf16.mxu0 0
    %381 = vmatpush1.bf16.msra.mxu0 0
    %382 = vmatprep.subr.bf16.mxu0 0
    %383 = vmatpush1.bf16.msra.mxu0 0
    %384 = vmatprep.subr.bf16.mxu0 0
    %385 = vmatpush1.bf16.msra.mxu0 0
    %386 = vmatprep.mubr.bf16.mxu0 0
    %387 = vmatmul.mubr.bf16.gmra.mrb[0].mxu0 %v72
    %v388 = vpop.f32.mrb[0].mxu0
    %v389 = vadd.f32 0.0, %v388
    %v390 = vpop.f32.mrb[0].mxu0
    %v391 = vpop.f32.mrb[0].mxu0
    %v392 = vadd.f32 0.0, %v391
    %v393 = vpop.f32.mrb[0].mxu0
    %394 = vmatprep.mubr.bf16.mxu0 0
    %395 = vmatmul.mubr.bf16.gmra.mrb[0].mxu0 %v73
    %v396 = vpop.f32.mrb[0].mxu0
    %v397 = vadd.f32 0.0, %v396
    %v398 = vpop.f32.mrb[0].mxu0
    %v399 = vpop.f32.mrb[0].mxu0
    %v400 = vadd.f32 0.0, %v399
    %v401 = vpop.f32.mrb[0].mxu0
    %402 = vdwg.mxu0
    %vm407 = vcmask 1045504
    %v408 = vrot.slane %v389, 2
    %v409 = vrot.slane %v392, 2
    %v410 = vsel %vm407, %v408, %v409
    %v411 = vrot.slane %v397, 2
    %v412 = vrot.slane %v400, 2
    %v413 = vsel %vm407, %v411, %v412
    %v416 = vadd.f32 %v288, %v410
    %v417 = vadd.f32 %v289, %v413
    %v418 = vld [vmem:[#allocation5 + $0xc0] sm:$0xf]
    %v419 = vld [vmem:[#allocation5 + $0xc4] sm:$0xf]
    %v420 = vld [vmem:[#allocation5 + $0xc8] sm:$0xf]
    %v421 = vld [vmem:[#allocation5 + $0xcc] sm:$0xf]
    %v422 = vld [vmem:[#allocation5 + $0xd0] sm:$0xf]
    %v423 = vld [vmem:[#allocation5 + $0xd4] sm:$0xf]
    %v424 = vld [vmem:[#allocation5 + $0xd8] sm:$0xf]
    %v425 = vld [vmem:[#allocation5 + $0xdc] sm:$0xf]
    %v426 = vld [vmem:[#allocation5 + $0xe0] sm:$0xf]
    %v427 = vld [vmem:[#allocation5 + $0xe4] sm:$0xf]
    %v428 = vld [vmem:[#allocation5 + $0xe8] sm:$0xf]
    %v429 = vld [vmem:[#allocation5 + $0xec] sm:$0xf]
    %v430 = vld [vmem:[#allocation5 + $0xf0] sm:$0xf]
    %v431 = vld [vmem:[#allocation5 + $0xf4] sm:$0xf]
    %v432 = vld [vmem:[#allocation5 + $0xf8] sm:$0xf]
    %v433 = vld [vmem:[#allocation5 + $0xfc] sm:$0xf]
    %v450 = vunpack.c.l.b16 %v418
    %v451 = vunpack.c.l.b16 %v419
    %v452 = vunpack.c.l.b16 %v420
    %v453 = vunpack.c.l.b16 %v421
    %v454 = vunpack.c.l.b16 %v422
    %v455 = vunpack.c.l.b16 %v423
    %v456 = vunpack.c.l.b16 %v424
    %v457 = vunpack.c.l.b16 %v425
    %v458 = vunpack.c.l.b16 %v426
    %v459 = vunpack.c.l.b16 %v427
    %v460 = vunpack.c.l.b16 %v428
    %v461 = vunpack.c.l.b16 %v429
    %v462 = vunpack.c.l.b16 %v430
    %v463 = vunpack.c.l.b16 %v431
    %v464 = vunpack.c.l.b16 %v432
    %v465 = vunpack.c.l.b16 %v433
    %v466 = vpack.c.b16 %v451, %v450
    %v467 = vpack.c.b16 %v453, %v452
    %v468 = vpack.c.b16 %v455, %v454
    %v469 = vpack.c.b16 %v457, %v456
    %v470 = vpack.c.b16 %v459, %v458
    %v471 = vpack.c.b16 %v461, %v460
    %v472 = vpack.c.b16 %v463, %v462
    %v473 = vpack.c.b16 %v465, %v464
    %482 = vmatprep.subr.bf16.mxu0 0
    %483 = vmatpush1.bf16.msra.mxu0 %v466
    %484 = vmatprep.subr.bf16.mxu0 0
    %485 = vmatpush1.bf16.msra.mxu0 %v467
    %486 = vmatprep.subr.bf16.mxu0 0
    %487 = vmatpush1.bf16.msra.mxu0 %v468
    %488 = vmatprep.subr.bf16.mxu0 0
    %489 = vmatpush1.bf16.msra.mxu0 %v469
    %490 = vmatprep.subr.bf16.mxu0 0
    %491 = vmatpush1.bf16.msra.mxu0 %v470
    %492 = vmatprep.subr.bf16.mxu0 0
    %493 = vmatpush1.bf16.msra.mxu0 %v471
    %494 = vmatprep.subr.bf16.mxu0 0
    %495 = vmatpush1.bf16.msra.mxu0 %v472
    %496 = vmatprep.subr.bf16.mxu0 0
    %497 = vmatpush1.bf16.msra.mxu0 %v473
    %498 = vmatprep.subr.bf16.mxu0 0
    %499 = vmatpush1.bf16.msra.mxu0 0
    %500 = vmatprep.subr.bf16.mxu0 0
    %501 = vmatpush1.bf16.msra.mxu0 0
    %502 = vmatprep.subr.bf16.mxu0 0
    %503 = vmatpush1.bf16.msra.mxu0 0
    %504 = vmatprep.subr.bf16.mxu0 0
    %505 = vmatpush1.bf16.msra.mxu0 0
    %506 = vmatprep.subr.bf16.mxu0 0
    %507 = vmatpush1.bf16.msra.mxu0 0
    %508 = vmatprep.subr.bf16.mxu0 0
    %509 = vmatpush1.bf16.msra.mxu0 0
    %510 = vmatprep.subr.bf16.mxu0 0
    %511 = vmatpush1.bf16.msra.mxu0 0
    %512 = vmatprep.subr.bf16.mxu0 0
    %513 = vmatpush1.bf16.msra.mxu0 0
    %514 = vmatprep.mubr.bf16.mxu0 0
    %515 = vmatmul.mubr.bf16.gmra.mrb[0].mxu0 %v72
    %v516 = vpop.f32.mrb[0].mxu0
    %v517 = vadd.f32 0.0, %v516
    %v518 = vpop.f32.mrb[0].mxu0
    %v519 = vpop.f32.mrb[0].mxu0
    %v520 = vadd.f32 0.0, %v519
    %v521 = vpop.f32.mrb[0].mxu0
    %522 = vmatprep.mubr.bf16.mxu0 0
    %523 = vmatmul.mubr.bf16.gmra.mrb[0].mxu0 %v73
    %v524 = vpop.f32.mrb[0].mxu0
    %v525 = vadd.f32 0.0, %v524
    %v526 = vpop.f32.mrb[0].mxu0
    %v527 = vpop.f32.mrb[0].mxu0
    %v528 = vadd.f32 0.0, %v527
    %v529 = vpop.f32.mrb[0].mxu0
    %530 = vdwg.mxu0
    %vm535 = vcmask 1044480
    %v536 = vrot.slane %v517, 3
    %v537 = vrot.slane %v520, 3
    %v538 = vsel %vm535, %v536, %v537
    %v539 = vrot.slane %v525, 3
    %v540 = vrot.slane %v528, 3
    %v541 = vsel %vm535, %v539, %v540
    %v544 = vadd.f32 %v416, %v538
    %v545 = vadd.f32 %v417, %v541
    %v546 = vsel %vm535, %v544, -inf
    %v547 = vrot.slane %v546, 4
    %v548 = vmax.f32 %v546, %v547
    %v549 = vrot.slane %v548, 2
    %v550 = vmax.f32 %v548, %v549
    %v551 = vrot.slane %v550, 1
    %v552 = vmax.f32 %v550, %v551
    %v553 = vsel %vm535, %v545, -inf
    %v554 = vrot.slane %v553, 4
    %v555 = vmax.f32 %v553, %v554
    %v556 = vrot.slane %v555, 2
    %v557 = vmax.f32 %v555, %v556
    %v558 = vrot.slane %v557, 1
    %v559 = vmax.f32 %v557, %v558
    %v560 = vlaneseq
    %v561 = vand.u32 %v560, 127
    %vm562 = vcmp.lt.s32.totalorder %v561, 16
    %v565 = vrot.slane %v544, 5
    %v566 = vrot.slane %v545, 4
    %vm567 = vcmask 1041409
    %v568 = vsel %vm567, %v566, %v565
    %v570 = vsel %vm562, %v568, -1e+30
    %v572 = vrot.slane %v570, 1
    %v575 = vmax.f32 %v552, %v570
    %v576 = vmax.f32 %v559, %v572
    %vm577 = vcmp.lt.s32.totalorder %v561, 8
    %v578 = vrot.slane %v544, 6
    %v579 = vrot.slane %v545, 5
    %v580 = vsel %vm567, %v579, %v578
    %v582 = vsel %vm577, %v580, -1e+30
    %v584 = vrot.slane %v582, 1
    %v587 = vmax.f32 %v575, %v582
    %v588 = vmax.f32 %v576, %v584
    %v589 = vld [vmem:[%s2] sm:$0x1]
    %v591 = vlaneseq
    %v592 = vshrl.u32 %v591, 7
    %v593 = vsub.s32 0, %v592
    %v594 = vrot.slane %v589, %v593
    %v596 = vadd.f32 %v587, %v594
    %v597 = vadd.f32 %v588, %v594
    %v598 = vmax.f32 %v596, 0.0
    %v599 = vmax.f32 %v597, 0.0
    %v602 = vrot.slane %v599, 7
    %v603 = vsel %vm567, %v602, %v598
    %605 = vst [vmem:[#allocation7] sm:$0x3] %v603
    // Predicated region
    $region22: #{tpu_custom_call.1} parent=1 // pred_check
      _
    $region23: #{tpu_custom_call.1} parent=1 // pred_check_branch
      %607 = sbr.rel (0) target = $region25
    $region24: #{tpu_custom_call.1} parent=1 // pred_region
      %s609 = ssub.s32 32, 32
      %610 = vsyncadd [#allocation4], %s609
      %s612 = sshll.u32 [#allocation7], 4
      %s613 = int_to_ptr.vmem [resolvable:$true] %s612
      %615 = dma.vmem_to_hbm [thread:$0]  %s613, 32, %s3, [#allocation4]
    $region25: #{tpu_custom_call.1} parent=1 // pred_fallthru
      _
    // Predicated region
    $region26: #{tpu_custom_call.1} parent=1 // pred_check
      _
    $region27: #{tpu_custom_call.1} parent=1 // pred_check_branch
      %617 = sbr.rel (0) target = $region29
    $region28: #{tpu_custom_call.1} parent=1 // pred_region
      %618 = dma.done [#allocation4], 32
    $region29: #{tpu_custom_call.1} parent=1 // pred_fallthru
      _
    %619 = vsyncpa [#allocation3], 1
    %620 = vsyncpa [#allocation6], 1
    %621 = vsyncpa [#allocation4], 1

</llo_original>
